<compile_context>
chip_gen: v7x
topology: tpu7x:2x2x1
jax: 0.10.0
libtpu: 0.0.40
codegen_flags: <defaults>
</compile_context>

<pallas_src>
import math

import jax
import jax.numpy as jnp
import numpy as np
from jax import lax
from jax.experimental import pallas as pl
from jax.experimental.pallas import tpu as pltpu


def _round_up(x, m):
    return -(-x // m) * m


def _choose_time_chunk(T, H, time_chunk):
    """Pick Tc so the lane-dense out block (B_pad, Tc*H) has lane width that is
    a multiple of 128, and pad T up to a multiple of Tc (never Tc=1)."""
    lane_align = 128 // math.gcd(H, 128)      # smallest Tc with Tc*H % 128 == 0
    Tc = _round_up(min(time_chunk, T), lane_align)
    T_pad = _round_up(T, Tc)
    return Tc, T_pad


def encoder_rnn_forward(inp, hid, emb_weight, w_ih, w_hh, b_ih, b_hh,
                        *, time_chunk=32):
    """EncoderRNN.forward(inp, hid) — eval mode (dropout layers are identity)."""
    h0, c0 = hid                                     # each (1, B, H)
    T, B = inp.shape
    H = h0.shape[-1]
    ninp = emb_weight.shape[1]
    G = 4 * H

    # --- embedding lookup, directly in bf16 (padding_idx only affects grads) --
    emb = jnp.take(emb_weight.astype(jnp.bfloat16), inp, axis=0)  # (T, B, ninp)

    # --- pad batch to a sublane multiple, time to a chunk multiple -----------
    B_pad = _round_up(max(B, 8), 8)
    Tc, T_pad = _choose_time_chunk(T, H, time_chunk)
    n_chunks = T_pad // Tc
    valid_last = T - (n_chunks - 1) * Tc             # valid steps in last chunk

    emb = jnp.pad(emb, ((0, T_pad - T), (0, B_pad - B), (0, 0)))
    emb2d = emb.reshape(T_pad * B_pad, ninp)         # rows grouped by time step

    h0_p = jnp.zeros((B_pad, H), jnp.float32).at[:B].set(h0.reshape(B, H))
    c0_p = jnp.zeros((B_pad, H), jnp.float32).at[:B].set(c0.reshape(B, H))

    wih_t = w_ih.T.astype(jnp.bfloat16)              # (ninp, 4H), VMEM resident
    whh_t = w_hh.T.astype(jnp.bfloat16)              # (H, 4H),   VMEM resident
    bias = (b_ih + b_hh).reshape(1, G).astype(jnp.float32)

    def kernel(x_ref, wih_ref, whh_ref, b_ref, h0_ref, c0_ref,
               out_ref, hn_ref, cn_ref, h_sc, c_sc):
        first = pl.program_id(0) == 0
        last = pl.program_id(0) == pl.num_programs(0) - 1

        @pl.when(first)
        def _():
            h_sc[...] = h0_ref[...]
            c_sc[...] = c0_ref[...]

        # Fused input projection for the whole chunk: one MXU matmul
        # (Tc*B_pad, ninp) x (ninp, 4H), bf16 operands, f32 accumulation.
        gx = jnp.dot(x_ref[...], wih_ref[...],
                     preferred_element_type=jnp.float32) + b_ref[...]

        not_last = jnp.logical_not(last)
        h = h_sc[...]
        c = c_sc[...]
        # Statically unrolled step loop: Tc is small and every slice offset is
        # a compile-time constant (sublane-aligned gx rows, lane-offset stores).
        for s in range(Tc):
            gates = gx[s * B_pad:(s + 1) * B_pad, :] + jnp.dot(
                h.astype(jnp.bfloat16), whh_ref[...],
                preferred_element_type=jnp.float32)              # (B_pad, 4H) f32
            # Full-vreg nonlinearities, then lane slices [i | f | g | o].
            sg = jax.nn.sigmoid(gates)
            th = jnp.tanh(gates)
            i_g = sg[:, 0 * H:1 * H]
            f_g = sg[:, 1 * H:2 * H]
            g_g = th[:, 2 * H:3 * H]
            o_g = sg[:, 3 * H:4 * H]
            c_new = f_g * c + i_g * g_g
            h_new = o_g * jnp.tanh(c_new)
            if s < valid_last:
                # Step is valid in every chunk.
                h, c = h_new, c_new
            else:
                # Step is time-padding in the last chunk: freeze the carry there.
                h = jnp.where(not_last, h_new, h)
                c = jnp.where(not_last, c_new, c)
            # Lane-dense resident output block; padded rows/steps are garbage
            # that the wrapper slices off.
            out_ref[:, s * H:(s + 1) * H] = h_new
        h_sc[...] = h
        c_sc[...] = c

        @pl.when(last)
        def _():
            hn_ref[...] = h
            cn_ref[...] = c

    out_flat, hn, cn = pl.pallas_call(
        kernel,
        out_shape=(jax.ShapeDtypeStruct((B_pad, T_pad * H), jnp.float32),
                   jax.ShapeDtypeStruct((B_pad, H), jnp.float32),
                   jax.ShapeDtypeStruct((B_pad, H), jnp.float32)),
        grid=(n_chunks,),
        in_specs=[
            pl.BlockSpec((Tc * B_pad, ninp), lambda b: (b, 0)),   # bf16 emb chunk
            pl.BlockSpec((ninp, G), lambda b: (0, 0)),            # W_ih^T resident
            pl.BlockSpec((H, G), lambda b: (0, 0)),               # W_hh^T resident
            pl.BlockSpec((1, G), lambda b: (0, 0)),               # fused bias
            pl.BlockSpec((B_pad, H), lambda b: (0, 0)),           # h0
            pl.BlockSpec((B_pad, H), lambda b: (0, 0)),           # c0
        ],
        out_specs=(
            pl.BlockSpec((B_pad, Tc * H), lambda b: (0, b)),      # lane-dense out
            pl.BlockSpec((B_pad, H), lambda b: (0, 0)),           # h_n
            pl.BlockSpec((B_pad, H), lambda b: (0, 0)),           # c_n
        ),
        scratch_shapes=[pltpu.VMEM((B_pad, H), jnp.float32),      # h carry
                        pltpu.VMEM((B_pad, H), jnp.float32)],     # c carry
        compiler_params=pltpu.CompilerParams(
            dimension_semantics=("arbitrary",)),                  # serial recurrence
    )(emb2d, wih_t, whh_t, bias, h0_p, c0_p)

    # (B_pad, T_pad*H) -> (T, B, H): layout plumbing in the wrapper.
    out = out_flat.reshape(B_pad, T_pad, H).transpose(1, 0, 2)[:T, :B, :]
    return out, (hn[:B].reshape(1, B, H), cn[:B].reshape(1, B, H))


def _reference_forward(inp, hid, emb_weight, w_ih, w_hh, b_ih, b_hh):
    """Pure-JAX f32 reference (lax.scan LSTM) for correctness check."""
    h0, c0 = hid
    emb = jnp.take(emb_weight, inp, axis=0)
    H = h0.shape[-1]

    def step(carry, x):
        h, c = carry
        gates = x @ w_ih.T + b_ih + h @ w_hh.T + b_hh
        i = jax.nn.sigmoid(gates[:, 0 * H:1 * H])
        f = jax.nn.sigmoid(gates[:, 1 * H:2 * H])
        g = jnp.tanh(gates[:, 2 * H:3 * H])
        o = jax.nn.sigmoid(gates[:, 3 * H:4 * H])
        c_new = f * c + i * g
        h_new = o * jnp.tanh(c_new)
        return (h_new, c_new), h_new

    (hn, cn), out = lax.scan(step, (h0[0], c0[0]), emb)
    return out, (hn[None], cn[None])


if __name__ == "__main__":
    ntoken, ninp, nhid = 50, 16, 32
    T, B = 8, 2
    padding_idx = 1  # forward lookup is unaffected by padding_idx

    key = jax.random.PRNGKey(0)
    k = jax.random.split(key, 6)

    # init_weights(): emb.weight ~ U(-0.1, 0.1)
    emb_w = jax.random.uniform(k[0], (ntoken, ninp), jnp.float32, -0.1, 0.1)
    # nn.LSTM default init: U(-1/sqrt(nhid), 1/sqrt(nhid)), gate order [i|f|g|o]
    stdv = 1.0 / float(np.sqrt(nhid))
    w_ih = jax.random.uniform(k[1], (4 * nhid, ninp), jnp.float32, -stdv, stdv)
    w_hh = jax.random.uniform(k[2], (4 * nhid, nhid), jnp.float32, -stdv, stdv)
    b_ih = jax.random.uniform(k[3], (4 * nhid,), jnp.float32, -stdv, stdv)
    b_hh = jax.random.uniform(k[4], (4 * nhid,), jnp.float32, -stdv, stdv)

    inp = jax.random.randint(k[5], (T, B), 0, ntoken, jnp.int32)
    # init_hidden(bsz): zeros
    hid = (jnp.zeros((1, B, nhid), jnp.float32),
           jnp.zeros((1, B, nhid), jnp.float32))

    out, (hn, cn) = encoder_rnn_forward(inp, hid, emb_w, w_ih, w_hh, b_ih, b_hh)
    jax.block_until_ready((out, hn, cn))

    out_ref, (hn_ref, cn_ref) = _reference_forward(
        inp, hid, emb_w, w_ih, w_hh, b_ih, b_hh)
    # Kernel uses bf16 embeddings/weights on the MXU with f32 accumulation;
    # compare against the pure-f32 reference with bf16-appropriate tolerances.
    np.testing.assert_allclose(np.asarray(out), np.asarray(out_ref),
                               rtol=2e-2, atol=2e-2)
    np.testing.assert_allclose(np.asarray(hn), np.asarray(hn_ref),
                               rtol=2e-2, atol=2e-2)
    np.testing.assert_allclose(np.asarray(cn), np.asarray(cn_ref),
                               rtol=2e-2, atol=2e-2)

    print("KERNEL_OK")
</pallas_src>

<mosaic_0001>
module attributes {stable_mosaic.version = 11 : i64} {
  func.func @kernel(%arg0: i32, %arg1: memref<64x16xbf16, #tpu.memory_space<vmem>>, %arg2: memref<16x128xbf16, #tpu.memory_space<vmem>>, %arg3: memref<32x128xbf16, #tpu.memory_space<vmem>>, %arg4: memref<1x128xf32, #tpu.memory_space<vmem>>, %arg5: memref<8x32xf32, #tpu.memory_space<vmem>>, %arg6: memref<8x32xf32, #tpu.memory_space<vmem>>, %arg7: memref<8x256xf32, #tpu.memory_space<vmem>>, %arg8: memref<8x32xf32, #tpu.memory_space<vmem>>, %arg9: memref<8x32xf32, #tpu.memory_space<vmem>>, %arg10: memref<8x32xf32, #tpu.memory_space<vmem>>, %arg11: memref<8x32xf32, #tpu.memory_space<vmem>>) attributes {dimension_semantics = [#tpu.dimension_semantics<arbitrary>], iteration_bounds = array<i64: 1>, scalar_prefetch = 0 : i64, scratch_operands = 2 : i64, tpu.core_type = #tpu.core_type<tc>, window_params = [{transform_indices = @transform_0, window_bounds = array<i64: 64, 16>}, {pipeline_mode = #tpu.pipeline_mode<synchronous>, transform_indices = @transform_1, window_bounds = array<i64: 16, 128>}, {pipeline_mode = #tpu.pipeline_mode<synchronous>, transform_indices = @transform_2, window_bounds = array<i64: 32, 128>}, {pipeline_mode = #tpu.pipeline_mode<synchronous>, transform_indices = @transform_3, window_bounds = array<i64: 1, 128>}, {pipeline_mode = #tpu.pipeline_mode<synchronous>, transform_indices = @transform_4, window_bounds = array<i64: 8, 32>}, {pipeline_mode = #tpu.pipeline_mode<synchronous>, transform_indices = @transform_5, window_bounds = array<i64: 8, 32>}, {transform_indices = @transform_6, window_bounds = array<i64: 8, 256>}, {pipeline_mode = #tpu.pipeline_mode<synchronous>, transform_indices = @transform_7, window_bounds = array<i64: 8, 32>}, {pipeline_mode = #tpu.pipeline_mode<synchronous>, transform_indices = @transform_8, window_bounds = array<i64: 8, 32>}]} {
    %c0_i32 = arith.constant 0 : i32
    %0 = arith.cmpi eq, %arg0, %c0_i32 : i32
    %c0_i32_0 = arith.constant 0 : i32
    %1 = arith.cmpi eq, %arg0, %c0_i32_0 : i32
    %2 = arith.extui %0 : i1 to i32
    %c0_i32_1 = arith.constant 0 : i32
    %3 = arith.cmpi ne, %2, %c0_i32_1 : i32
    scf.if %3 {
      %c0_57 = arith.constant 0 : index
      %c0_58 = arith.constant 0 : index
      %184 = vector.load %arg5[%c0_57, %c0_58] : memref<8x32xf32, #tpu.memory_space<vmem>>, vector<8x32xf32>
      %c0_59 = arith.constant 0 : index
      %c0_60 = arith.constant 0 : index
      %185 = vector.load %arg10[%c0_59, %c0_60] : memref<8x32xf32, #tpu.memory_space<vmem>>, vector<8x32xf32>
      tpu.vector_store %arg10[%c0_59, %c0_60], %184 {strides = array<i32>} : memref<8x32xf32, #tpu.memory_space<vmem>>, vector<8x32xf32>,
      %c0_61 = arith.constant 0 : index
      %c0_62 = arith.constant 0 : index
      %186 = vector.load %arg6[%c0_61, %c0_62] : memref<8x32xf32, #tpu.memory_space<vmem>>, vector<8x32xf32>
      %c0_63 = arith.constant 0 : index
      %c0_64 = arith.constant 0 : index
      %187 = vector.load %arg11[%c0_63, %c0_64] : memref<8x32xf32, #tpu.memory_space<vmem>>, vector<8x32xf32>
      tpu.vector_store %arg11[%c0_63, %c0_64], %186 {strides = array<i32>} : memref<8x32xf32, #tpu.memory_space<vmem>>, vector<8x32xf32>,
    } else {
    }
    %c0 = arith.constant 0 : index
    %c0_2 = arith.constant 0 : index
    %4 = vector.load %arg1[%c0, %c0_2] : memref<64x16xbf16, #tpu.memory_space<vmem>>, vector<64x16xbf16>
    %c0_3 = arith.constant 0 : index
    %c0_4 = arith.constant 0 : index
    %5 = vector.load %arg2[%c0_3, %c0_4] : memref<16x128xbf16, #tpu.memory_space<vmem>>, vector<16x128xbf16>
    %cst = arith.constant dense<0.000000e+00> : vector<64x128xf32>
    %6 = tpu.matmul %4, %5, %cst {dimension_numbers = #tpu.dot_dimension_numbers<[1], [0], [0], [1], [0, 0, 1, 1], [], []>} : vector<64x16xbf16>, vector<16x128xbf16>, vector<64x128xf32> -> vector<64x128xf32>
    %c0_5 = arith.constant 0 : index
    %c0_6 = arith.constant 0 : index
    %7 = vector.load %arg4[%c0_5, %c0_6] : memref<1x128xf32, #tpu.memory_space<vmem>>, vector<1x128xf32>
    %8 = vector.broadcast %7 : vector<1x128xf32> to vector<64x128xf32>
    %9 = arith.addf %6, %8 : vector<64x128xf32>
    %c0_7 = arith.constant 0 : index
    %c0_8 = arith.constant 0 : index
    %10 = vector.load %arg10[%c0_7, %c0_8] : memref<8x32xf32, #tpu.memory_space<vmem>>, vector<8x32xf32>
    %c0_9 = arith.constant 0 : index
    %c0_10 = arith.constant 0 : index
    %11 = vector.load %arg11[%c0_9, %c0_10] : memref<8x32xf32, #tpu.memory_space<vmem>>, vector<8x32xf32>
    %12 = vector.extract_strided_slice %9 {offsets = [0, 0], sizes = [8, 128], strides = [1, 1]} : vector<64x128xf32> to vector<8x128xf32>
    %13 = arith.truncf %10 : vector<8x32xf32> to vector<8x32xbf16>
    %c0_11 = arith.constant 0 : index
    %c0_12 = arith.constant 0 : index
    %14 = vector.load %arg3[%c0_11, %c0_12] : memref<32x128xbf16, #tpu.memory_space<vmem>>, vector<32x128xbf16>
    %cst_13 = arith.constant dense<0.000000e+00> : vector<8x128xf32>
    %15 = tpu.matmul %13, %14, %cst_13 {dimension_numbers = #tpu.dot_dimension_numbers<[1], [0], [0], [1], [0, 0, 1, 1], [], []>} : vector<8x32xbf16>, vector<32x128xbf16>, vector<8x128xf32> -> vector<8x128xf32>
    %16 = arith.addf %12, %15 : vector<8x128xf32>
    %17 = arith.negf %16 : vector<8x128xf32>
    %18 = math.exp %17 : vector<8x128xf32>
    %cst_14 = arith.constant 1.000000e+00 : f32
    %19 = vector.broadcast %cst_14 : f32 to vector<8x128xf32>
    %20 = arith.addf %19, %18 : vector<8x128xf32>
    %21 = arith.divf %19, %20 : vector<8x128xf32>
    %22 = math.tanh %16 : vector<8x128xf32>
    %23 = vector.extract_strided_slice %21 {offsets = [0, 0], sizes = [8, 32], strides = [1, 1]} : vector<8x128xf32> to vector<8x32xf32>
    %24 = vector.extract_strided_slice %21 {offsets = [0, 32], sizes = [8, 32], strides = [1, 1]} : vector<8x128xf32> to vector<8x32xf32>
    %25 = vector.extract_strided_slice %22 {offsets = [0, 64], sizes = [8, 32], strides = [1, 1]} : vector<8x128xf32> to vector<8x32xf32>
    %26 = vector.extract_strided_slice %21 {offsets = [0, 96], sizes = [8, 32], strides = [1, 1]} : vector<8x128xf32> to vector<8x32xf32>
    %27 = arith.mulf %24, %11 : vector<8x32xf32>
    %28 = arith.mulf %23, %25 : vector<8x32xf32>
    %29 = arith.addf %27, %28 : vector<8x32xf32>
    %30 = math.tanh %29 : vector<8x32xf32>
    %31 = arith.mulf %26, %30 : vector<8x32xf32>
    %c0_15 = arith.constant 0 : index
    %c0_16 = arith.constant 0 : index
    %32 = vector.load %arg7[%c0_15, %c0_16] : memref<8x256xf32, #tpu.memory_space<vmem>>, vector<8x32xf32>
    tpu.vector_store %arg7[%c0_15, %c0_16], %31 {strides = array<i32>} : memref<8x256xf32, #tpu.memory_space<vmem>>, vector<8x32xf32>,
    %33 = vector.extract_strided_slice %9 {offsets = [8, 0], sizes = [8, 128], strides = [1, 1]} : vector<64x128xf32> to vector<8x128xf32>
    %34 = arith.truncf %31 : vector<8x32xf32> to vector<8x32xbf16>
    %c0_17 = arith.constant 0 : index
    %c0_18 = arith.constant 0 : index
    %35 = vector.load %arg3[%c0_17, %c0_18] : memref<32x128xbf16, #tpu.memory_space<vmem>>, vector<32x128xbf16>
    %cst_19 = arith.constant dense<0.000000e+00> : vector<8x128xf32>
    %36 = tpu.matmul %34, %35, %cst_19 {dimension_numbers = #tpu.dot_dimension_numbers<[1], [0], [0], [1], [0, 0, 1, 1], [], []>} : vector<8x32xbf16>, vector<32x128xbf16>, vector<8x128xf32> -> vector<8x128xf32>
    %37 = arith.addf %33, %36 : vector<8x128xf32>
    %38 = arith.negf %37 : vector<8x128xf32>
    %39 = math.exp %38 : vector<8x128xf32>
    %cst_20 = arith.constant 1.000000e+00 : f32
    %40 = vector.broadcast %cst_20 : f32 to vector<8x128xf32>
    %41 = arith.addf %40, %39 : vector<8x128xf32>
    %42 = arith.divf %40, %41 : vector<8x128xf32>
    %43 = math.tanh %37 : vector<8x128xf32>
    %44 = vector.extract_strided_slice %42 {offsets = [0, 0], sizes = [8, 32], strides = [1, 1]} : vector<8x128xf32> to vector<8x32xf32>
    %45 = vector.extract_strided_slice %42 {offsets = [0, 32], sizes = [8, 32], strides = [1, 1]} : vector<8x128xf32> to vector<8x32xf32>
    %46 = vector.extract_strided_slice %43 {offsets = [0, 64], sizes = [8, 32], strides = [1, 1]} : vector<8x128xf32> to vector<8x32xf32>
    %47 = vector.extract_strided_slice %42 {offsets = [0, 96], sizes = [8, 32], strides = [1, 1]} : vector<8x128xf32> to vector<8x32xf32>
    %48 = arith.mulf %45, %29 : vector<8x32xf32>
    %49 = arith.mulf %44, %46 : vector<8x32xf32>
    %50 = arith.addf %48, %49 : vector<8x32xf32>
    %51 = math.tanh %50 : vector<8x32xf32>
    %52 = arith.mulf %47, %51 : vector<8x32xf32>
    %c0_21 = arith.constant 0 : index
    %c32 = arith.constant 32 : index
    %53 = vector.load %arg7[%c0_21, %c32] : memref<8x256xf32, #tpu.memory_space<vmem>>, vector<8x32xf32>
    tpu.vector_store %arg7[%c0_21, %c32], %52 {strides = array<i32>} : memref<8x256xf32, #tpu.memory_space<vmem>>, vector<8x32xf32>,
    %54 = vector.extract_strided_slice %9 {offsets = [16, 0], sizes = [8, 128], strides = [1, 1]} : vector<64x128xf32> to vector<8x128xf32>
    %55 = arith.truncf %52 : vector<8x32xf32> to vector<8x32xbf16>
    %c0_22 = arith.constant 0 : index
    %c0_23 = arith.constant 0 : index
    %56 = vector.load %arg3[%c0_22, %c0_23] : memref<32x128xbf16, #tpu.memory_space<vmem>>, vector<32x128xbf16>
    %cst_24 = arith.constant dense<0.000000e+00> : vector<8x128xf32>
    %57 = tpu.matmul %55, %56, %cst_24 {dimension_numbers = #tpu.dot_dimension_numbers<[1], [0], [0], [1], [0, 0, 1, 1], [], []>} : vector<8x32xbf16>, vector<32x128xbf16>, vector<8x128xf32> -> vector<8x128xf32>
    %58 = arith.addf %54, %57 : vector<8x128xf32>
    %59 = arith.negf %58 : vector<8x128xf32>
    %60 = math.exp %59 : vector<8x128xf32>
    %cst_25 = arith.constant 1.000000e+00 : f32
    %61 = vector.broadcast %cst_25 : f32 to vector<8x128xf32>
    %62 = arith.addf %61, %60 : vector<8x128xf32>
    %63 = arith.divf %61, %62 : vector<8x128xf32>
    %64 = math.tanh %58 : vector<8x128xf32>
    %65 = vector.extract_strided_slice %63 {offsets = [0, 0], sizes = [8, 32], strides = [1, 1]} : vector<8x128xf32> to vector<8x32xf32>
    %66 = vector.extract_strided_slice %63 {offsets = [0, 32], sizes = [8, 32], strides = [1, 1]} : vector<8x128xf32> to vector<8x32xf32>
    %67 = vector.extract_strided_slice %64 {offsets = [0, 64], sizes = [8, 32], strides = [1, 1]} : vector<8x128xf32> to vector<8x32xf32>
    %68 = vector.extract_strided_slice %63 {offsets = [0, 96], sizes = [8, 32], strides = [1, 1]} : vector<8x128xf32> to vector<8x32xf32>
    %69 = arith.mulf %66, %50 : vector<8x32xf32>
    %70 = arith.mulf %65, %67 : vector<8x32xf32>
    %71 = arith.addf %69, %70 : vector<8x32xf32>
    %72 = math.tanh %71 : vector<8x32xf32>
    %73 = arith.mulf %68, %72 : vector<8x32xf32>
    %c0_26 = arith.constant 0 : index
    %c64 = arith.constant 64 : index
    %74 = vector.load %arg7[%c0_26, %c64] : memref<8x256xf32, #tpu.memory_space<vmem>>, vector<8x32xf32>
    tpu.vector_store %arg7[%c0_26, %c64], %73 {strides = array<i32>} : memref<8x256xf32, #tpu.memory_space<vmem>>, vector<8x32xf32>,
    %75 = vector.extract_strided_slice %9 {offsets = [24, 0], sizes = [8, 128], strides = [1, 1]} : vector<64x128xf32> to vector<8x128xf32>
    %76 = arith.truncf %73 : vector<8x32xf32> to vector<8x32xbf16>
    %c0_27 = arith.constant 0 : index
    %c0_28 = arith.constant 0 : index
    %77 = vector.load %arg3[%c0_27, %c0_28] : memref<32x128xbf16, #tpu.memory_space<vmem>>, vector<32x128xbf16>
    %cst_29 = arith.constant dense<0.000000e+00> : vector<8x128xf32>
    %78 = tpu.matmul %76, %77, %cst_29 {dimension_numbers = #tpu.dot_dimension_numbers<[1], [0], [0], [1], [0, 0, 1, 1], [], []>} : vector<8x32xbf16>, vector<32x128xbf16>, vector<8x128xf32> -> vector<8x128xf32>
    %79 = arith.addf %75, %78 : vector<8x128xf32>
    %80 = arith.negf %79 : vector<8x128xf32>
    %81 = math.exp %80 : vector<8x128xf32>
    %cst_30 = arith.constant 1.000000e+00 : f32
    %82 = vector.broadcast %cst_30 : f32 to vector<8x128xf32>
    %83 = arith.addf %82, %81 : vector<8x128xf32>
    %84 = arith.divf %82, %83 : vector<8x128xf32>
    %85 = math.tanh %79 : vector<8x128xf32>
    %86 = vector.extract_strided_slice %84 {offsets = [0, 0], sizes = [8, 32], strides = [1, 1]} : vector<8x128xf32> to vector<8x32xf32>
    %87 = vector.extract_strided_slice %84 {offsets = [0, 32], sizes = [8, 32], strides = [1, 1]} : vector<8x128xf32> to vector<8x32xf32>
    %88 = vector.extract_strided_slice %85 {offsets = [0, 64], sizes = [8, 32], strides = [1, 1]} : vector<8x128xf32> to vector<8x32xf32>
    %89 = vector.extract_strided_slice %84 {offsets = [0, 96], sizes = [8, 32], strides = [1, 1]} : vector<8x128xf32> to vector<8x32xf32>
    %90 = arith.mulf %87, %71 : vector<8x32xf32>
    %91 = arith.mulf %86, %88 : vector<8x32xf32>
    %92 = arith.addf %90, %91 : vector<8x32xf32>
    %93 = math.tanh %92 : vector<8x32xf32>
    %94 = arith.mulf %89, %93 : vector<8x32xf32>
    %c0_31 = arith.constant 0 : index
    %c96 = arith.constant 96 : index
    %95 = vector.load %arg7[%c0_31, %c96] : memref<8x256xf32, #tpu.memory_space<vmem>>, vector<8x32xf32>
    tpu.vector_store %arg7[%c0_31, %c96], %94 {strides = array<i32>} : memref<8x256xf32, #tpu.memory_space<vmem>>, vector<8x32xf32>,
    %96 = vector.extract_strided_slice %9 {offsets = [32, 0], sizes = [8, 128], strides = [1, 1]} : vector<64x128xf32> to vector<8x128xf32>
    %97 = arith.truncf %94 : vector<8x32xf32> to vector<8x32xbf16>
    %c0_32 = arith.constant 0 : index
    %c0_33 = arith.constant 0 : index
    %98 = vector.load %arg3[%c0_32, %c0_33] : memref<32x128xbf16, #tpu.memory_space<vmem>>, vector<32x128xbf16>
    %cst_34 = arith.constant dense<0.000000e+00> : vector<8x128xf32>
    %99 = tpu.matmul %97, %98, %cst_34 {dimension_numbers = #tpu.dot_dimension_numbers<[1], [0], [0], [1], [0, 0, 1, 1], [], []>} : vector<8x32xbf16>, vector<32x128xbf16>, vector<8x128xf32> -> vector<8x128xf32>
    %100 = arith.addf %96, %99 : vector<8x128xf32>
    %101 = arith.negf %100 : vector<8x128xf32>
    %102 = math.exp %101 : vector<8x128xf32>
    %cst_35 = arith.constant 1.000000e+00 : f32
    %103 = vector.broadcast %cst_35 : f32 to vector<8x128xf32>
    %104 = arith.addf %103, %102 : vector<8x128xf32>
    %105 = arith.divf %103, %104 : vector<8x128xf32>
    %106 = math.tanh %100 : vector<8x128xf32>
    %107 = vector.extract_strided_slice %105 {offsets = [0, 0], sizes = [8, 32], strides = [1, 1]} : vector<8x128xf32> to vector<8x32xf32>
    %108 = vector.extract_strided_slice %105 {offsets = [0, 32], sizes = [8, 32], strides = [1, 1]} : vector<8x128xf32> to vector<8x32xf32>
    %109 = vector.extract_strided_slice %106 {offsets = [0, 64], sizes = [8, 32], strides = [1, 1]} : vector<8x128xf32> to vector<8x32xf32>
    %110 = vector.extract_strided_slice %105 {offsets = [0, 96], sizes = [8, 32], strides = [1, 1]} : vector<8x128xf32> to vector<8x32xf32>
    %111 = arith.mulf %108, %92 : vector<8x32xf32>
    %112 = arith.mulf %107, %109 : vector<8x32xf32>
    %113 = arith.addf %111, %112 : vector<8x32xf32>
    %114 = math.tanh %113 : vector<8x32xf32>
    %115 = arith.mulf %110, %114 : vector<8x32xf32>
    %c0_36 = arith.constant 0 : index
    %c128 = arith.constant 128 : index
    %116 = vector.load %arg7[%c0_36, %c128] : memref<8x256xf32, #tpu.memory_space<vmem>>, vector<8x32xf32>
    tpu.vector_store %arg7[%c0_36, %c128], %115 {strides = array<i32>} : memref<8x256xf32, #tpu.memory_space<vmem>>, vector<8x32xf32>,
    %117 = vector.extract_strided_slice %9 {offsets = [40, 0], sizes = [8, 128], strides = [1, 1]} : vector<64x128xf32> to vector<8x128xf32>
    %118 = arith.truncf %115 : vector<8x32xf32> to vector<8x32xbf16>
    %c0_37 = arith.constant 0 : index
    %c0_38 = arith.constant 0 : index
    %119 = vector.load %arg3[%c0_37, %c0_38] : memref<32x128xbf16, #tpu.memory_space<vmem>>, vector<32x128xbf16>
    %cst_39 = arith.constant dense<0.000000e+00> : vector<8x128xf32>
    %120 = tpu.matmul %118, %119, %cst_39 {dimension_numbers = #tpu.dot_dimension_numbers<[1], [0], [0], [1], [0, 0, 1, 1], [], []>} : vector<8x32xbf16>, vector<32x128xbf16>, vector<8x128xf32> -> vector<8x128xf32>
    %121 = arith.addf %117, %120 : vector<8x128xf32>
    %122 = arith.negf %121 : vector<8x128xf32>
    %123 = math.exp %122 : vector<8x128xf32>
    %cst_40 = arith.constant 1.000000e+00 : f32
    %124 = vector.broadcast %cst_40 : f32 to vector<8x128xf32>
    %125 = arith.addf %124, %123 : vector<8x128xf32>
    %126 = arith.divf %124, %125 : vector<8x128xf32>
    %127 = math.tanh %121 : vector<8x128xf32>
    %128 = vector.extract_strided_slice %126 {offsets = [0, 0], sizes = [8, 32], strides = [1, 1]} : vector<8x128xf32> to vector<8x32xf32>
    %129 = vector.extract_strided_slice %126 {offsets = [0, 32], sizes = [8, 32], strides = [1, 1]} : vector<8x128xf32> to vector<8x32xf32>
    %130 = vector.extract_strided_slice %127 {offsets = [0, 64], sizes = [8, 32], strides = [1, 1]} : vector<8x128xf32> to vector<8x32xf32>
    %131 = vector.extract_strided_slice %126 {offsets = [0, 96], sizes = [8, 32], strides = [1, 1]} : vector<8x128xf32> to vector<8x32xf32>
    %132 = arith.mulf %129, %113 : vector<8x32xf32>
    %133 = arith.mulf %128, %130 : vector<8x32xf32>
    %134 = arith.addf %132, %133 : vector<8x32xf32>
    %135 = math.tanh %134 : vector<8x32xf32>
    %136 = arith.mulf %131, %135 : vector<8x32xf32>
    %c0_41 = arith.constant 0 : index
    %c160 = arith.constant 160 : index
    %137 = vector.load %arg7[%c0_41, %c160] : memref<8x256xf32, #tpu.memory_space<vmem>>, vector<8x32xf32>
    tpu.vector_store %arg7[%c0_41, %c160], %136 {strides = array<i32>} : memref<8x256xf32, #tpu.memory_space<vmem>>, vector<8x32xf32>,
    %138 = vector.extract_strided_slice %9 {offsets = [48, 0], sizes = [8, 128], strides = [1, 1]} : vector<64x128xf32> to vector<8x128xf32>
    %139 = arith.truncf %136 : vector<8x32xf32> to vector<8x32xbf16>
    %c0_42 = arith.constant 0 : index
    %c0_43 = arith.constant 0 : index
    %140 = vector.load %arg3[%c0_42, %c0_43] : memref<32x128xbf16, #tpu.memory_space<vmem>>, vector<32x128xbf16>
    %cst_44 = arith.constant dense<0.000000e+00> : vector<8x128xf32>
    %141 = tpu.matmul %139, %140, %cst_44 {dimension_numbers = #tpu.dot_dimension_numbers<[1], [0], [0], [1], [0, 0, 1, 1], [], []>} : vector<8x32xbf16>, vector<32x128xbf16>, vector<8x128xf32> -> vector<8x128xf32>
    %142 = arith.addf %138, %141 : vector<8x128xf32>
    %143 = arith.negf %142 : vector<8x128xf32>
    %144 = math.exp %143 : vector<8x128xf32>
    %cst_45 = arith.constant 1.000000e+00 : f32
    %145 = vector.broadcast %cst_45 : f32 to vector<8x128xf32>
    %146 = arith.addf %145, %144 : vector<8x128xf32>
    %147 = arith.divf %145, %146 : vector<8x128xf32>
    %148 = math.tanh %142 : vector<8x128xf32>
    %149 = vector.extract_strided_slice %147 {offsets = [0, 0], sizes = [8, 32], strides = [1, 1]} : vector<8x128xf32> to vector<8x32xf32>
    %150 = vector.extract_strided_slice %147 {offsets = [0, 32], sizes = [8, 32], strides = [1, 1]} : vector<8x128xf32> to vector<8x32xf32>
    %151 = vector.extract_strided_slice %148 {offsets = [0, 64], sizes = [8, 32], strides = [1, 1]} : vector<8x128xf32> to vector<8x32xf32>
    %152 = vector.extract_strided_slice %147 {offsets = [0, 96], sizes = [8, 32], strides = [1, 1]} : vector<8x128xf32> to vector<8x32xf32>
    %153 = arith.mulf %150, %134 : vector<8x32xf32>
    %154 = arith.mulf %149, %151 : vector<8x32xf32>
    %155 = arith.addf %153, %154 : vector<8x32xf32>
    %156 = math.tanh %155 : vector<8x32xf32>
    %157 = arith.mulf %152, %156 : vector<8x32xf32>
    %c0_46 = arith.constant 0 : index
    %c192 = arith.constant 192 : index
    %158 = vector.load %arg7[%c0_46, %c192] : memref<8x256xf32, #tpu.memory_space<vmem>>, vector<8x32xf32>
    tpu.vector_store %arg7[%c0_46, %c192], %157 {strides = array<i32>} : memref<8x256xf32, #tpu.memory_space<vmem>>, vector<8x32xf32>,
    %159 = vector.extract_strided_slice %9 {offsets = [56, 0], sizes = [8, 128], strides = [1, 1]} : vector<64x128xf32> to vector<8x128xf32>
    %160 = arith.truncf %157 : vector<8x32xf32> to vector<8x32xbf16>
    %c0_47 = arith.constant 0 : index
    %c0_48 = arith.constant 0 : index
    %161 = vector.load %arg3[%c0_47, %c0_48] : memref<32x128xbf16, #tpu.memory_space<vmem>>, vector<32x128xbf16>
    %cst_49 = arith.constant dense<0.000000e+00> : vector<8x128xf32>
    %162 = tpu.matmul %160, %161, %cst_49 {dimension_numbers = #tpu.dot_dimension_numbers<[1], [0], [0], [1], [0, 0, 1, 1], [], []>} : vector<8x32xbf16>, vector<32x128xbf16>, vector<8x128xf32> -> vector<8x128xf32>
    %163 = arith.addf %159, %162 : vector<8x128xf32>
    %164 = arith.negf %163 : vector<8x128xf32>
    %165 = math.exp %164 : vector<8x128xf32>
    %cst_50 = arith.constant 1.000000e+00 : f32
    %166 = vector.broadcast %cst_50 : f32 to vector<8x128xf32>
    %167 = arith.addf %166, %165 : vector<8x128xf32>
    %168 = arith.divf %166, %167 : vector<8x128xf32>
    %169 = math.tanh %163 : vector<8x128xf32>
    %170 = vector.extract_strided_slice %168 {offsets = [0, 0], sizes = [8, 32], strides = [1, 1]} : vector<8x128xf32> to vector<8x32xf32>
    %171 = vector.extract_strided_slice %168 {offsets = [0, 32], sizes = [8, 32], strides = [1, 1]} : vector<8x128xf32> to vector<8x32xf32>
    %172 = vector.extract_strided_slice %169 {offsets = [0, 64], sizes = [8, 32], strides = [1, 1]} : vector<8x128xf32> to vector<8x32xf32>
    %173 = vector.extract_strided_slice %168 {offsets = [0, 96], sizes = [8, 32], strides = [1, 1]} : vector<8x128xf32> to vector<8x32xf32>
    %174 = arith.mulf %171, %155 : vector<8x32xf32>
    %175 = arith.mulf %170, %172 : vector<8x32xf32>
    %176 = arith.addf %174, %175 : vector<8x32xf32>
    %177 = math.tanh %176 : vector<8x32xf32>
    %178 = arith.mulf %173, %177 : vector<8x32xf32>
    %c0_51 = arith.constant 0 : index
    %c224 = arith.constant 224 : index
    %179 = vector.load %arg7[%c0_51, %c224] : memref<8x256xf32, #tpu.memory_space<vmem>>, vector<8x32xf32>
    tpu.vector_store %arg7[%c0_51, %c224], %178 {strides = array<i32>} : memref<8x256xf32, #tpu.memory_space<vmem>>, vector<8x32xf32>,
    %c0_52 = arith.constant 0 : index
    %c0_53 = arith.constant 0 : index
    %180 = vector.load %arg10[%c0_52, %c0_53] : memref<8x32xf32, #tpu.memory_space<vmem>>, vector<8x32xf32>
    tpu.vector_store %arg10[%c0_52, %c0_53], %178 {strides = array<i32>} : memref<8x32xf32, #tpu.memory_space<vmem>>, vector<8x32xf32>,
    %c0_54 = arith.constant 0 : index
    %c0_55 = arith.constant 0 : index
    %181 = vector.load %arg11[%c0_54, %c0_55] : memref<8x32xf32, #tpu.memory_space<vmem>>, vector<8x32xf32>
    tpu.vector_store %arg11[%c0_54, %c0_55], %176 {strides = array<i32>} : memref<8x32xf32, #tpu.memory_space<vmem>>, vector<8x32xf32>,
    %182 = arith.extui %1 : i1 to i32
    %c0_i32_56 = arith.constant 0 : i32
    %183 = arith.cmpi ne, %182, %c0_i32_56 : i32
    scf.if %183 {
      %c0_57 = arith.constant 0 : index
      %c0_58 = arith.constant 0 : index
      %184 = vector.load %arg8[%c0_57, %c0_58] : memref<8x32xf32, #tpu.memory_space<vmem>>, vector<8x32xf32>
      tpu.vector_store %arg8[%c0_57, %c0_58], %178 {strides = array<i32>} : memref<8x32xf32, #tpu.memory_space<vmem>>, vector<8x32xf32>,
      %c0_59 = arith.constant 0 : index
      %c0_60 = arith.constant 0 : index
      %185 = vector.load %arg9[%c0_59, %c0_60] : memref<8x32xf32, #tpu.memory_space<vmem>>, vector<8x32xf32>
      tpu.vector_store %arg9[%c0_59, %c0_60], %176 {strides = array<i32>} : memref<8x32xf32, #tpu.memory_space<vmem>>, vector<8x32xf32>,
    } else {
    }
    return
  }
  func.func @transform_0(%arg0: i32) -> (i32, i32) {
    %c0_i32 = arith.constant 0 : i32
    %c0_i32_0 = arith.constant 0 : i32
    return %arg0, %c0_i32 : i32, i32
  }
  func.func @transform_1(%arg0: i32) -> (i32, i32) {
    %c0_i32 = arith.constant 0 : i32
    %c0_i32_0 = arith.constant 0 : i32
    %c0_i32_1 = arith.constant 0 : i32
    return %c0_i32, %c0_i32_0 : i32, i32
  }
  func.func @transform_2(%arg0: i32) -> (i32, i32) {
    %c0_i32 = arith.constant 0 : i32
    %c0_i32_0 = arith.constant 0 : i32
    %c0_i32_1 = arith.constant 0 : i32
    return %c0_i32, %c0_i32_0 : i32, i32
  }
  func.func @transform_3(%arg0: i32) -> (i32, i32) {
    %c0_i32 = arith.constant 0 : i32
    %c0_i32_0 = arith.constant 0 : i32
    %c0_i32_1 = arith.constant 0 : i32
    return %c0_i32, %c0_i32_0 : i32, i32
  }
  func.func @transform_4(%arg0: i32) -> (i32, i32) {
    %c0_i32 = arith.constant 0 : i32
    %c0_i32_0 = arith.constant 0 : i32
    %c0_i32_1 = arith.constant 0 : i32
    return %c0_i32, %c0_i32_0 : i32, i32
  }
  func.func @transform_5(%arg0: i32) -> (i32, i32) {
    %c0_i32 = arith.constant 0 : i32
    %c0_i32_0 = arith.constant 0 : i32
    %c0_i32_1 = arith.constant 0 : i32
    return %c0_i32, %c0_i32_0 : i32, i32
  }
  func.func @transform_6(%arg0: i32) -> (i32, i32) {
    %c0_i32 = arith.constant 0 : i32
    %c0_i32_0 = arith.constant 0 : i32
    return %c0_i32, %arg0 : i32, i32
  }
  func.func @transform_7(%arg0: i32) -> (i32, i32) {
    %c0_i32 = arith.constant 0 : i32
    %c0_i32_0 = arith.constant 0 : i32
    %c0_i32_1 = arith.constant 0 : i32
    return %c0_i32, %c0_i32_0 : i32, i32
  }
  func.func @transform_8(%arg0: i32) -> (i32, i32) {
    %c0_i32 = arith.constant 0 : i32
    %c0_i32_0 = arith.constant 0 : i32
    %c0_i32_1 = arith.constant 0 : i32
    return %c0_i32, %c0_i32_0 : i32, i32
  }
}

</mosaic_0001>

<llo_original>
// kernel: tpu_custom_call.1
$region0: #{tpu_custom_call.1}
  #allocation0 [shape = 'u32[]', space=smem, size = 0x4, offset = 0x4, fixed_abs, tag = 'smem constant byte address 0x4 - core index']
  #allocation1 [shape = 'u32[144,128]{1,0:T(1,128)}', space=vmem, size = 0x12000, scoped, tag = 'internal scratch']
  #allocation2 [shape = 'f32[8,32]{1,0:T(8,128)}', space=vmem, size = 0x1000, scoped, tag = 'scratch operand']
  #allocation3 [shape = 'f32[8,32]{1,0:T(8,128)}', space=vmem, size = 0x1000, scoped, tag = 'scratch operand']
  %s0 = inlined_call_operand.vmem [shape: bf16[64,16], index: 0, kind: input, shape index: {}]
  %s1 = inlined_call_operand.vmem [shape: bf16[16,128], index: 1, kind: input, shape index: {}]
  %s2 = inlined_call_operand.vmem [shape: bf16[32,128], index: 2, kind: input, shape index: {}]
  %s3 = inlined_call_operand.vmem [shape: f32[1,128], index: 3, kind: input, shape index: {}]
  %s4 = inlined_call_operand.vmem [shape: f32[8,32], index: 4, kind: input, shape index: {}]
  %s5 = inlined_call_operand.vmem [shape: f32[8,32], index: 5, kind: input, shape index: {}]
  %s6 = inlined_call_operand.hbm [shape: f32[8,256], index: 6, kind: output, shape index: {0}]
  %s7 = inlined_call_operand.hbm [shape: f32[8,32], index: 7, kind: output, shape index: {1}]
  %s8 = inlined_call_operand.hbm [shape: f32[8,32], index: 8, kind: output, shape index: {2}]
  %9 = xla_tuple %s6, %s7, %s8
  %s10 = sld [smem:[#allocation0]]
  $region58: #{tpu_custom_call.1} parent=0
    _
  %s12 = ssub.s32 1, %s10
  %s13 = scalar_select 0, %s12, %s10
  $region1: #{tpu_custom_call.1} parent=0
    #allocation4 [shape = 'u8[8192]{0}', space=vmem, size = 0x2000, scoped, tag = 'output window, operand 0, single buffered']
    #allocation5 [shape = 's32[1]{0}', space=sflag, size = 0x4, scoped, tag = 'scoped memory for tpu_custom_call.1']
    #allocation6 [shape = 'u8[4096]{0}', space=vmem, size = 0x1000, scoped, tag = 'output window, operand 1, single buffered']
    #allocation7 [shape = 's32[1]{0}', space=sflag, size = 0x4, scoped, tag = 'scoped memory for tpu_custom_call.1']
    #allocation8 [shape = 'u8[4096]{0}', space=vmem, size = 0x1000, scoped, tag = 'output window, operand 2, single buffered']
    %14 = vsyncpa [#allocation5], 0
    %15 = vsyncpa [#allocation7], 0
    // Predicated region
    $region2: #{tpu_custom_call.1} parent=1 // pred_check
      _
    $region3: #{tpu_custom_call.1} parent=1 // pred_check_branch
      %17 = sbr.rel (0) target = $region5
    $region4: #{tpu_custom_call.1} parent=1 // pred_region
      _
    $region5: #{tpu_custom_call.1} parent=1 // pred_fallthru
      _
    // Predicated region
    $region6: #{tpu_custom_call.1} parent=1 // pred_check
      _
    $region7: #{tpu_custom_call.1} parent=1 // pred_check_branch
      %19 = sbr.rel (0) target = $region9
    $region8: #{tpu_custom_call.1} parent=1 // pred_region
      _
    $region9: #{tpu_custom_call.1} parent=1 // pred_fallthru
      _
    // Predicated region
    $region10: #{tpu_custom_call.1} parent=1 // pred_check
      _
    $region11: #{tpu_custom_call.1} parent=1 // pred_check_branch
      %21 = sbr.rel (0) target = $region13
    $region12: #{tpu_custom_call.1} parent=1 // pred_region
      _
    $region13: #{tpu_custom_call.1} parent=1 // pred_fallthru
      _
    // Predicated region
    $region14: #{tpu_custom_call.1} parent=1 // pred_check
      _
    $region15: #{tpu_custom_call.1} parent=1 // pred_check_branch
      %23 = sbr.rel (0) target = $region17
    $region16: #{tpu_custom_call.1} parent=1 // pred_region
      _
    $region17: #{tpu_custom_call.1} parent=1 // pred_fallthru
      _
    // Predicated region
    $region18: #{tpu_custom_call.1} parent=1 // pred_check
      _
    $region19: #{tpu_custom_call.1} parent=1 // pred_check_branch
      %25 = sbr.rel (0) target = $region21
    $region20: #{tpu_custom_call.1} parent=1 // pred_region
      _
    $region21: #{tpu_custom_call.1} parent=1 // pred_fallthru
      _
    // Predicated region
    $region22: #{tpu_custom_call.1} parent=1 // pred_check
      _
    $region23: #{tpu_custom_call.1} parent=1 // pred_check_branch
      %27 = sbr.rel (0) target = $region25
    $region24: #{tpu_custom_call.1} parent=1 // pred_region
      _
    $region25: #{tpu_custom_call.1} parent=1 // pred_fallthru
      _
    %p29 = scmp.eq.s32.totalorder 0, 0
    // Predicated region
    $region26: #{tpu_custom_call.1} parent=1 // pred_check
      %p30 = pneg %p29
    $region27: #{tpu_custom_call.1} parent=1 // pred_check_branch
      %32 = sbr.rel (%p30) target = $region29
    $region28: #{tpu_custom_call.1} parent=1 // pred_region
      %v33 = vld [vmem:[%s4] sm:$0xff]
      %vm34 = vcmask 261120
      %35 = vst.msk [vmem:[#allocation2] sm:$0xff] %vm34, %v33
      %v36 = vld [vmem:[%s5] sm:$0xff]
      %37 = vst.msk [vmem:[#allocation3] sm:$0xff] %vm34, %v36
    $region29: #{tpu_custom_call.1} parent=1 // pred_fallthru
      _
    %v38 = vld [vmem:[%s0] sm:$0xf]
    %v39 = vld [vmem:[%s0 + $0x4] sm:$0xf]
    %v40 = vld [vmem:[%s0 + $0x8] sm:$0xf]
    %v41 = vld [vmem:[%s0 + $0xc] sm:$0xf]
    %v42 = vld [vmem:[%s0 + $0x10] sm:$0xf]
    %v43 = vld [vmem:[%s0 + $0x14] sm:$0xf]
    %v44 = vld [vmem:[%s0 + $0x18] sm:$0xf]
    %v45 = vld [vmem:[%s0 + $0x1c] sm:$0xf]
    %v46 = vld [vmem:[%s1] sm:$0xf]
    %v47 = vld [vmem:[%s1 + $0x4] sm:$0xf]
    %v48 = vld [vmem:[%s3] sm:$0x1]
    %v50 = vlaneseq
    %v51 = vshrl.u32 %v50, 7
    %v52 = vsub.s32 0, %v51
    %v53 = vrot.slane %v48, %v52
    %v63 = vunpack.c.l.b16 %v38
    %v64 = vunpack.c.l.b16 %v39
    %v65 = vunpack.c.l.b16 %v40
    %v66 = vunpack.c.l.b16 %v41
    %v67 = vunpack.c.l.b16 %v42
    %v68 = vunpack.c.l.b16 %v43
    %v69 = vunpack.c.l.b16 %v44
    %v70 = vunpack.c.l.b16 %v45
    %v71 = vpack.c.b16 %v64, %v63
    %v72 = vpack.c.b16 %v66, %v65
    %v73 = vpack.c.b16 %v68, %v67
    %v74 = vpack.c.b16 %v70, %v69
    %v77 = vunpack.c.l.b16 %v46
    %v78 = vunpack.c.l.b16 %v47
    %v79 = vpack.c.b16 %v78, %v77
    %vm81 = vcmask 130048
    %v83 = vsel %vm81, %v71, 0
    %v86 = vsel %vm81, %v72, 0
    %v89 = vsel %vm81, %v73, 0
    %v92 = vsel %vm81, %v74, 0
    %94 = vmatprep.subr.bf16.mxu0 0
    %95 = vmatpush1.bf16.msra.mxu0 %v79
    %96 = vmatprep.subr.bf16.mxu0 0
    %97 = vmatpush1.bf16.msra.mxu0 0
    %98 = vmatprep.subr.bf16.mxu0 0
    %99 = vmatpush1.bf16.msra.mxu0 0
    %100 = vmatprep.subr.bf16.mxu0 0
    %101 = vmatpush1.bf16.msra.mxu0 0
    %102 = vmatprep.subr.bf16.mxu0 0
    %103 = vmatpush1.bf16.msra.mxu0 0
    %104 = vmatprep.subr.bf16.mxu0 0
    %105 = vmatpush1.bf16.msra.mxu0 0
    %106 = vmatprep.subr.bf16.mxu0 0
    %107 = vmatpush1.bf16.msra.mxu0 0
    %108 = vmatprep.subr.bf16.mxu0 0
    %109 = vmatpush1.bf16.msra.mxu0 0
    %110 = vmatprep.subr.bf16.mxu0 0
    %111 = vmatpush1.bf16.msra.mxu0 0
    %112 = vmatprep.subr.bf16.mxu0 0
    %113 = vmatpush1.bf16.msra.mxu0 0
    %114 = vmatprep.subr.bf16.mxu0 0
    %115 = vmatpush1.bf16.msra.mxu0 0
    %116 = vmatprep.subr.bf16.mxu0 0
    %117 = vmatpush1.bf16.msra.mxu0 0
    %118 = vmatprep.subr.bf16.mxu0 0
    %119 = vmatpush1.bf16.msra.mxu0 0
    %120 = vmatprep.subr.bf16.mxu0 0
    %121 = vmatpush1.bf16.msra.mxu0 0
    %122 = vmatprep.subr.bf16.mxu0 0
    %123 = vmatpush1.bf16.msra.mxu0 0
    %124 = vmatprep.subr.bf16.mxu0 0
    %125 = vmatpush1.bf16.msra.mxu0 0
    %126 = vmatprep.mubr.bf16.mxu0 0
    %127 = vmatmul.mubr.bf16.gmra.mrb[0].mxu0 %v83
    %v128 = vpop.f32.mrb[0].mxu0
    %v129 = vadd.f32 %v53, %v128
    %v130 = vpop.f32.mrb[0].mxu0
    %v131 = vpop.f32.mrb[0].mxu0
    %v132 = vadd.f32 %v53, %v131
    %v133 = vpop.f32.mrb[0].mxu0
    %134 = vmatprep.mubr.bf16.mxu0 0
    %135 = vmatmul.mubr.bf16.gmra.mrb[0].mxu0 %v86
    %v136 = vpop.f32.mrb[0].mxu0
    %v137 = vadd.f32 %v53, %v136
    %v138 = vpop.f32.mrb[0].mxu0
    %v139 = vpop.f32.mrb[0].mxu0
    %v140 = vadd.f32 %v53, %v139
    %v141 = vpop.f32.mrb[0].mxu0
    %142 = vmatprep.mubr.bf16.mxu0 0
    %143 = vmatmul.mubr.bf16.gmra.mrb[0].mxu0 %v89
    %v144 = vpop.f32.mrb[0].mxu0
    %v145 = vadd.f32 %v53, %v144
    %v146 = vpop.f32.mrb[0].mxu0
    %v147 = vpop.f32.mrb[0].mxu0
    %v148 = vadd.f32 %v53, %v147
    %v149 = vpop.f32.mrb[0].mxu0
    %150 = vmatprep.mubr.bf16.mxu0 0
    %151 = vmatmul.mubr.bf16.gmra.mrb[0].mxu0 %v92
    %v152 = vpop.f32.mrb[0].mxu0
    %v153 = vadd.f32 %v53, %v152
    %v154 = vpop.f32.mrb[0].mxu0
    %v155 = vpop.f32.mrb[0].mxu0
    %v156 = vadd.f32 %v53, %v155
    %v157 = vpop.f32.mrb[0].mxu0
    %158 = vdwg.mxu0
    %v159 = vld [vmem:[#allocation2] sm:$0xff]
    %v160 = vld [vmem:[#allocation3] sm:$0xff]
    %v161 = vpack.c.bf16 %v159, %v159
    %v162 = vld [vmem:[%s2] sm:$0xf]
    %v163 = vld [vmem:[%s2 + $0x4] sm:$0xf]
    %v164 = vld [vmem:[%s2 + $0x8] sm:$0xf]
    %v165 = vld [vmem:[%s2 + $0xc] sm:$0xf]
    %v170 = vunpack.c.l.b16 %v162
    %v171 = vunpack.c.l.b16 %v163
    %v172 = vunpack.c.l.b16 %v164
    %v173 = vunpack.c.l.b16 %v165
    %v174 = vpack.c.b16 %v171, %v170
    %v175 = vpack.c.b16 %v173, %v172
    %vm178 = vcmask 261120
    %v180 = vsel %vm178, %v161, 0
    %182 = vmatprep.subr.bf16.mxu0 0
    %183 = vmatpush1.bf16.msra.mxu0 %v174
    %184 = vmatprep.subr.bf16.mxu0 0
    %185 = vmatpush1.bf16.msra.mxu0 %v175
    %186 = vmatprep.subr.bf16.mxu0 0
    %187 = vmatpush1.bf16.msra.mxu0 0
    %188 = vmatprep.subr.bf16.mxu0 0
    %189 = vmatpush1.bf16.msra.mxu0 0
    %190 = vmatprep.subr.bf16.mxu0 0
    %191 = vmatpush1.bf16.msra.mxu0 0
    %192 = vmatprep.subr.bf16.mxu0 0
    %193 = vmatpush1.bf16.msra.mxu0 0
    %194 = vmatprep.subr.bf16.mxu0 0
    %195 = vmatpush1.bf16.msra.mxu0 0
    %196 = vmatprep.subr.bf16.mxu0 0
    %197 = vmatpush1.bf16.msra.mxu0 0
    %198 = vmatprep.subr.bf16.mxu0 0
    %199 = vmatpush1.bf16.msra.mxu0 0
    %200 = vmatprep.subr.bf16.mxu0 0
    %201 = vmatpush1.bf16.msra.mxu0 0
    %202 = vmatprep.subr.bf16.mxu0 0
    %203 = vmatpush1.bf16.msra.mxu0 0
    %204 = vmatprep.subr.bf16.mxu0 0
    %205 = vmatpush1.bf16.msra.mxu0 0
    %206 = vmatprep.subr.bf16.mxu0 0
    %207 = vmatpush1.bf16.msra.mxu0 0
    %208 = vmatprep.subr.bf16.mxu0 0
    %209 = vmatpush1.bf16.msra.mxu0 0
    %210 = vmatprep.subr.bf16.mxu0 0
    %211 = vmatpush1.bf16.msra.mxu0 0
    %212 = vmatprep.subr.bf16.mxu0 0
    %213 = vmatpush1.bf16.msra.mxu0 0
    %214 = vmatprep.mubr.bf16.mxu0 0
    %215 = vmatmul.mubr.bf16.gmra.mrb[0].mxu0 %v180
    %v216 = vpop.f32.mrb[0].mxu0
    %v217 = vadd.f32 0.0, %v216
    %v218 = vpop.f32.mrb[0].mxu0
    %v219 = vpop.f32.mrb[0].mxu0
    %v220 = vpop.f32.mrb[0].mxu0
    %221 = vdwg.mxu0
    %v222 = vadd.f32 %v129, %v217
    %v223 = vxor.u32 %v222, 2147483648
    %v224 = vmul.f32 %v223, 1.442695
    %v225 = vpow.pop %v224
    %v226 = vadd.f32 %v225, 1.0
    %v227 = vrcp.pop %v226
    %v228 = vmul.f32 1.0, %v227
    %v229 = vtanh.pop %v222
    %231 = vrot.lane.b32.xlu0 %v160, 32
    %v232 = vpop.permute.xlu0 %231
    %v234 = vmul.f32 %v228, %v232
    %236 = vrot.lane.b32.xlu0 %v229, 64
    %v237 = vpop.permute.xlu0 %236
    %v239 = vmul.f32 %v228, %v237
    %241 = vrot.lane.b32.xlu0 %v239, 32
    %v242 = vpop.permute.xlu0 %241
    %v244 = vadd.f32 %v234, %v242
    %v245 = vtanh.pop %v244
    %247 = vrot.lane.b32.xlu0 %v245, 64
    %v248 = vpop.permute.xlu0 %247
    %v250 = vmul.f32 %v228, %v248
    %252 = vrot.lane.b32.xlu0 %v250, 32
    %v253 = vpop.permute.xlu0 %252
    %255 = vst.msk [vmem:[#allocation4] sm:$0xff] %vm178, %v253
    %v256 = vpack.c.bf16 %v250, %v250
    %v257 = vld [vmem:[%s2] sm:$0xf]
    %v258 = vld [vmem:[%s2 + $0x4] sm:$0xf]
    %v259 = vld [vmem:[%s2 + $0x8] sm:$0xf]
    %v260 = vld [vmem:[%s2 + $0xc] sm:$0xf]
    %262 = vrot.lane.b32.xlu0 %v256, 32
    %v263 = vpop.permute.xlu0 %262
    %v268 = vunpack.c.l.b16 %v257
    %v269 = vunpack.c.l.b16 %v258
    %v270 = vunpack.c.l.b16 %v259
    %v271 = vunpack.c.l.b16 %v260
    %v272 = vpack.c.b16 %v269, %v268
    %v273 = vpack.c.b16 %v271, %v270
    %v277 = vsel %vm178, %v263, 0
    %279 = vmatprep.subr.bf16.mxu0 0
    %280 = vmatpush1.bf16.msra.mxu0 %v272
    %281 = vmatprep.subr.bf16.mxu0 0
    %282 = vmatpush1.bf16.msra.mxu0 %v273
    %283 = vmatprep.subr.bf16.mxu0 0
    %284 = vmatpush1.bf16.msra.mxu0 0
    %285 = vmatprep.subr.bf16.mxu0 0
    %286 = vmatpush1.bf16.msra.mxu0 0
    %287 = vmatprep.subr.bf16.mxu0 0
    %288 = vmatpush1.bf16.msra.mxu0 0
    %289 = vmatprep.subr.bf16.mxu0 0
    %290 = vmatpush1.bf16.msra.mxu0 0
    %291 = vmatprep.subr.bf16.mxu0 0
    %292 = vmatpush1.bf16.msra.mxu0 0
    %293 = vmatprep.subr.bf16.mxu0 0
    %294 = vmatpush1.bf16.msra.mxu0 0
    %295 = vmatprep.subr.bf16.mxu0 0
    %296 = vmatpush1.bf16.msra.mxu0 0
    %297 = vmatprep.subr.bf16.mxu0 0
    %298 = vmatpush1.bf16.msra.mxu0 0
    %299 = vmatprep.subr.bf16.mxu0 0
    %300 = vmatpush1.bf16.msra.mxu0 0
    %301 = vmatprep.subr.bf16.mxu0 0
    %302 = vmatpush1.bf16.msra.mxu0 0
    %303 = vmatprep.subr.bf16.mxu0 0
    %304 = vmatpush1.bf16.msra.mxu0 0
    %305 = vmatprep.subr.bf16.mxu0 0
    %306 = vmatpush1.bf16.msra.mxu0 0
    %307 = vmatprep.subr.bf16.mxu0 0
    %308 = vmatpush1.bf16.msra.mxu0 0
    %309 = vmatprep.subr.bf16.mxu0 0
    %310 = vmatpush1.bf16.msra.mxu0 0
    %311 = vmatprep.mubr.bf16.mxu0 0
    %312 = vmatmul.mubr.bf16.gmra.mrb[0].mxu0 %v277
    %v313 = vpop.f32.mrb[0].mxu0
    %v314 = vadd.f32 0.0, %v313
    %v315 = vpop.f32.mrb[0].mxu0
    %v316 = vpop.f32.mrb[0].mxu0
    %v317 = vpop.f32.mrb[0].mxu0
    %318 = vdwg.mxu0
    %v319 = vadd.f32 %v132, %v314
    %v320 = vxor.u32 %v319, 2147483648
    %v321 = vmul.f32 %v320, 1.442695
    %v322 = vpow.pop %v321
    %v323 = vadd.f32 %v322, 1.0
    %v324 = vrcp.pop %v323
    %v325 = vmul.f32 1.0, %v324
    %v326 = vtanh.pop %v319
    %v327 = vmul.f32 %v325, %v244
    %329 = vrot.lane.b32.xlu0 %v326, 64
    %v330 = vpop.permute.xlu0 %329
    %v332 = vmul.f32 %v325, %v330
    %334 = vrot.lane.b32.xlu0 %v332, 32
    %v335 = vpop.permute.xlu0 %334
    %v337 = vadd.f32 %v327, %v335
    %v338 = vtanh.pop %v337
    %340 = vrot.lane.b32.xlu0 %v338, 64
    %v341 = vpop.permute.xlu0 %340
    %v343 = vmul.f32 %v325, %v341
    %345 = vrot.lane.b32.xlu0 %v343, 64
    %v346 = vpop.permute.xlu0 %345
    %vm348 = vcmask 523520
    %349 = vst.msk [vmem:[#allocation4] sm:$0xff] %vm348, %v346
    %v350 = vpack.c.bf16 %v343, %v343
    %v351 = vld [vmem:[%s2] sm:$0xf]
    %v352 = vld [vmem:[%s2 + $0x4] sm:$0xf]
    %v353 = vld [vmem:[%s2 + $0x8] sm:$0xf]
    %v354 = vld [vmem:[%s2 + $0xc] sm:$0xf]
    %356 = vrot.lane.b32.xlu0 %v350, 32
    %v357 = vpop.permute.xlu0 %356
    %v362 = vunpack.c.l.b16 %v351
    %v363 = vunpack.c.l.b16 %v352
    %v364 = vunpack.c.l.b16 %v353
    %v365 = vunpack.c.l.b16 %v354
    %v366 = vpack.c.b16 %v363, %v362
    %v367 = vpack.c.b16 %v365, %v364
    %v371 = vsel %vm178, %v357, 0
    %373 = vmatprep.subr.bf16.mxu0 0
    %374 = vmatpush1.bf16.msra.mxu0 %v366
    %375 = vmatprep.subr.bf16.mxu0 0
    %376 = vmatpush1.bf16.msra.mxu0 %v367
    %377 = vmatprep.subr.bf16.mxu0 0
    %378 = vmatpush1.bf16.msra.mxu0 0
    %379 = vmatprep.subr.bf16.mxu0 0
    %380 = vmatpush1.bf16.msra.mxu0 0
    %381 = vmatprep.subr.bf16.mxu0 0
    %382 = vmatpush1.bf16.msra.mxu0 0
    %383 = vmatprep.subr.bf16.mxu0 0
    %384 = vmatpush1.bf16.msra.mxu0 0
    %385 = vmatprep.subr.bf16.mxu0 0
    %386 = vmatpush1.bf16.msra.mxu0 0
    %387 = vmatprep.subr.bf16.mxu0 0
    %388 = vmatpush1.bf16.msra.mxu0 0
    %389 = vmatprep.subr.bf16.mxu0 0
    %390 = vmatpush1.bf16.msra.mxu0 0
    %391 = vmatprep.subr.bf16.mxu0 0
    %392 = vmatpush1.bf16.msra.mxu0 0
    %393 = vmatprep.subr.bf16.mxu0 0
    %394 = vmatpush1.bf16.msra.mxu0 0
    %395 = vmatprep.subr.bf16.mxu0 0
    %396 = vmatpush1.bf16.msra.mxu0 0
    %397 = vmatprep.subr.bf16.mxu0 0
    %398 = vmatpush1.bf16.msra.mxu0 0
    %399 = vmatprep.subr.bf16.mxu0 0
    %400 = vmatpush1.bf16.msra.mxu0 0
    %401 = vmatprep.subr.bf16.mxu0 0
    %402 = vmatpush1.bf16.msra.mxu0 0
    %403 = vmatprep.subr.bf16.mxu0 0
    %404 = vmatpush1.bf16.msra.mxu0 0
    %405 = vmatprep.mubr.bf16.mxu0 0
    %406 = vmatmul.mubr.bf16.gmra.mrb[0].mxu0 %v371
    %v407 = vpop.f32.mrb[0].mxu0
    %v408 = vadd.f32 0.0, %v407
    %v409 = vpop.f32.mrb[0].mxu0
    %v410 = vpop.f32.mrb[0].mxu0
    %v411 = vpop.f32.mrb[0].mxu0
    %412 = vdwg.mxu0
    %v413 = vadd.f32 %v137, %v408
    %v414 = vxor.u32 %v413, 2147483648
    %v415 = vmul.f32 %v414, 1.442695
    %v416 = vpow.pop %v415
    %v417 = vadd.f32 %v416, 1.0
    %v418 = vrcp.pop %v417
    %v419 = vmul.f32 1.0, %v418
    %v420 = vtanh.pop %v413
    %v421 = vmul.f32 %v419, %v337
    %423 = vrot.lane.b32.xlu0 %v420, 64
    %v424 = vpop.permute.xlu0 %423
    %v426 = vmul.f32 %v419, %v424
    %428 = vrot.lane.b32.xlu0 %v426, 32
    %v429 = vpop.permute.xlu0 %428
    %v431 = vadd.f32 %v421, %v429
    %v432 = vtanh.pop %v431
    %434 = vrot.lane.b32.xlu0 %v432, 64
    %v435 = vpop.permute.xlu0 %434
    %v437 = vmul.f32 %v419, %v435
    %439 = vrot.lane.b32.xlu0 %v437, 96
    %v440 = vpop.permute.xlu0 %439
    %vm442 = vcmask 785920
    %443 = vst.msk [vmem:[#allocation4] sm:$0xff] %vm442, %v440
    %v444 = vpack.c.bf16 %v437, %v437
    %v445 = vld [vmem:[%s2] sm:$0xf]
    %v446 = vld [vmem:[%s2 + $0x4] sm:$0xf]
    %v447 = vld [vmem:[%s2 + $0x8] sm:$0xf]
    %v448 = vld [vmem:[%s2 + $0xc] sm:$0xf]
    %450 = vrot.lane.b32.xlu0 %v444, 32
    %v451 = vpop.permute.xlu0 %450
    %v456 = vunpack.c.l.b16 %v445
    %v457 = vunpack.c.l.b16 %v446
    %v458 = vunpack.c.l.b16 %v447
    %v459 = vunpack.c.l.b16 %v448
    %v460 = vpack.c.b16 %v457, %v456
    %v461 = vpack.c.b16 %v459, %v458
    %v465 = vsel %vm178, %v451, 0
    %467 = vmatprep.subr.bf16.mxu0 0
    %468 = vmatpush1.bf16.msra.mxu0 %v460
    %469 = vmatprep.subr.bf16.mxu0 0
    %470 = vmatpush1.bf16.msra.mxu0 %v461
    %471 = vmatprep.subr.bf16.mxu0 0
    %472 = vmatpush1.bf16.msra.mxu0 0
    %473 = vmatprep.subr.bf16.mxu0 0
    %474 = vmatpush1.bf16.msra.mxu0 0
    %475 = vmatprep.subr.bf16.mxu0 0
    %476 = vmatpush1.bf16.msra.mxu0 0
    %477 = vmatprep.subr.bf16.mxu0 0
    %478 = vmatpush1.bf16.msra.mxu0 0
    %479 = vmatprep.subr.bf16.mxu0 0
    %480 = vmatpush1.bf16.msra.mxu0 0
    %481 = vmatprep.subr.bf16.mxu0 0
    %482 = vmatpush1.bf16.msra.mxu0 0
    %483 = vmatprep.subr.bf16.mxu0 0
    %484 = vmatpush1.bf16.msra.mxu0 0
    %485 = vmatprep.subr.bf16.mxu0 0
    %486 = vmatpush1.bf16.msra.mxu0 0
    %487 = vmatprep.subr.bf16.mxu0 0
    %488 = vmatpush1.bf16.msra.mxu0 0
    %489 = vmatprep.subr.bf16.mxu0 0
    %490 = vmatpush1.bf16.msra.mxu0 0
    %491 = vmatprep.subr.bf16.mxu0 0
    %492 = vmatpush1.bf16.msra.mxu0 0
    %493 = vmatprep.subr.bf16.mxu0 0
    %494 = vmatpush1.bf16.msra.mxu0 0
    %495 = vmatprep.subr.bf16.mxu0 0
    %496 = vmatpush1.bf16.msra.mxu0 0
    %497 = vmatprep.subr.bf16.mxu0 0
    %498 = vmatpush1.bf16.msra.mxu0 0
    %499 = vmatprep.mubr.bf16.mxu0 0
    %500 = vmatmul.mubr.bf16.gmra.mrb[0].mxu0 %v465
    %v501 = vpop.f32.mrb[0].mxu0
    %v502 = vadd.f32 0.0, %v501
    %v503 = vpop.f32.mrb[0].mxu0
    %v504 = vpop.f32.mrb[0].mxu0
    %v505 = vpop.f32.mrb[0].mxu0
    %506 = vdwg.mxu0
    %v507 = vadd.f32 %v140, %v502
    %v508 = vxor.u32 %v507, 2147483648
    %v509 = vmul.f32 %v508, 1.442695
    %v510 = vpow.pop %v509
    %v511 = vadd.f32 %v510, 1.0
    %v512 = vrcp.pop %v511
    %v513 = vmul.f32 1.0, %v512
    %v514 = vtanh.pop %v507
    %v515 = vmul.f32 %v513, %v431
    %517 = vrot.lane.b32.xlu0 %v514, 64
    %v518 = vpop.permute.xlu0 %517
    %v520 = vmul.f32 %v513, %v518
    %522 = vrot.lane.b32.xlu0 %v520, 32
    %v523 = vpop.permute.xlu0 %522
    %v525 = vadd.f32 %v515, %v523
    %v526 = vtanh.pop %v525
    %528 = vrot.lane.b32.xlu0 %v526, 64
    %v529 = vpop.permute.xlu0 %528
    %v531 = vmul.f32 %v513, %v529
    %vm532 = vcmask 1048320
    %533 = vst.msk [vmem:[#allocation4] sm:$0xff] %vm532, %v531
    %v534 = vpack.c.bf16 %v531, %v531
    %v535 = vld [vmem:[%s2] sm:$0xf]
    %v536 = vld [vmem:[%s2 + $0x4] sm:$0xf]
    %v537 = vld [vmem:[%s2 + $0x8] sm:$0xf]
    %v538 = vld [vmem:[%s2 + $0xc] sm:$0xf]
    %540 = vrot.lane.b32.xlu0 %v534, 32
    %v541 = vpop.permute.xlu0 %540
    %v546 = vunpack.c.l.b16 %v535
    %v547 = vunpack.c.l.b16 %v536
    %v548 = vunpack.c.l.b16 %v537
    %v549 = vunpack.c.l.b16 %v538
    %v550 = vpack.c.b16 %v547, %v546
    %v551 = vpack.c.b16 %v549, %v548
    %v555 = vsel %vm178, %v541, 0
    %557 = vmatprep.subr.bf16.mxu0 0
    %558 = vmatpush1.bf16.msra.mxu0 %v550
    %559 = vmatprep.subr.bf16.mxu0 0
    %560 = vmatpush1.bf16.msra.mxu0 %v551
    %561 = vmatprep.subr.bf16.mxu0 0
    %562 = vmatpush1.bf16.msra.mxu0 0
    %563 = vmatprep.subr.bf16.mxu0 0
    %564 = vmatpush1.bf16.msra.mxu0 0
    %565 = vmatprep.subr.bf16.mxu0 0
    %566 = vmatpush1.bf16.msra.mxu0 0
    %567 = vmatprep.subr.bf16.mxu0 0
    %568 = vmatpush1.bf16.msra.mxu0 0
    %569 = vmatprep.subr.bf16.mxu0 0
    %570 = vmatpush1.bf16.msra.mxu0 0
    %571 = vmatprep.subr.bf16.mxu0 0
    %572 = vmatpush1.bf16.msra.mxu0 0
    %573 = vmatprep.subr.bf16.mxu0 0
    %574 = vmatpush1.bf16.msra.mxu0 0
    %575 = vmatprep.subr.bf16.mxu0 0
    %576 = vmatpush1.bf16.msra.mxu0 0
    %577 = vmatprep.subr.bf16.mxu0 0
    %578 = vmatpush1.bf16.msra.mxu0 0
    %579 = vmatprep.subr.bf16.mxu0 0
    %580 = vmatpush1.bf16.msra.mxu0 0
    %581 = vmatprep.subr.bf16.mxu0 0
    %582 = vmatpush1.bf16.msra.mxu0 0
    %583 = vmatprep.subr.bf16.mxu0 0
    %584 = vmatpush1.bf16.msra.mxu0 0
    %585 = vmatprep.subr.bf16.mxu0 0
    %586 = vmatpush1.bf16.msra.mxu0 0
    %587 = vmatprep.subr.bf16.mxu0 0
    %588 = vmatpush1.bf16.msra.mxu0 0
    %589 = vmatprep.mubr.bf16.mxu0 0
    %590 = vmatmul.mubr.bf16.gmra.mrb[0].mxu0 %v555
    %v591 = vpop.f32.mrb[0].mxu0
    %v592 = vadd.f32 0.0, %v591
    %v593 = vpop.f32.mrb[0].mxu0
    %v594 = vpop.f32.mrb[0].mxu0
    %v595 = vpop.f32.mrb[0].mxu0
    %596 = vdwg.mxu0
    %v597 = vadd.f32 %v145, %v592
    %v598 = vxor.u32 %v597, 2147483648
    %v599 = vmul.f32 %v598, 1.442695
    %v600 = vpow.pop %v599
    %v601 = vadd.f32 %v600, 1.0
    %v602 = vrcp.pop %v601
    %v603 = vmul.f32 1.0, %v602
    %v604 = vtanh.pop %v597
    %v605 = vmul.f32 %v603, %v525
    %607 = vrot.lane.b32.xlu0 %v604, 64
    %v608 = vpop.permute.xlu0 %607
    %v610 = vmul.f32 %v603, %v608
    %612 = vrot.lane.b32.xlu0 %v610, 32
    %v613 = vpop.permute.xlu0 %612
    %v615 = vadd.f32 %v605, %v613
    %v616 = vtanh.pop %v615
    %618 = vrot.lane.b32.xlu0 %v616, 64
    %v619 = vpop.permute.xlu0 %618
    %v621 = vmul.f32 %v603, %v619
    %623 = vrot.lane.b32.xlu0 %v621, 32
    %v624 = vpop.permute.xlu0 %623
    %626 = vst.msk [vmem:[#allocation4 + $0x8] sm:$0xff] %vm178, %v624
    %v627 = vpack.c.bf16 %v621, %v621
    %v628 = vld [vmem:[%s2] sm:$0xf]
    %v629 = vld [vmem:[%s2 + $0x4] sm:$0xf]
    %v630 = vld [vmem:[%s2 + $0x8] sm:$0xf]
    %v631 = vld [vmem:[%s2 + $0xc] sm:$0xf]
    %633 = vrot.lane.b32.xlu0 %v627, 32
    %v634 = vpop.permute.xlu0 %633
    %v639 = vunpack.c.l.b16 %v628
    %v640 = vunpack.c.l.b16 %v629
    %v641 = vunpack.c.l.b16 %v630
    %v642 = vunpack.c.l.b16 %v631
    %v643 = vpack.c.b16 %v640, %v639
    %v644 = vpack.c.b16 %v642, %v641
    %v648 = vsel %vm178, %v634, 0
    %650 = vmatprep.subr.bf16.mxu0 0
    %651 = vmatpush1.bf16.msra.mxu0 %v643
    %652 = vmatprep.subr.bf16.mxu0 0
    %653 = vmatpush1.bf16.msra.mxu0 %v644
    %654 = vmatprep.subr.bf16.mxu0 0
    %655 = vmatpush1.bf16.msra.mxu0 0
    %656 = vmatprep.subr.bf16.mxu0 0
    %657 = vmatpush1.bf16.msra.mxu0 0
    %658 = vmatprep.subr.bf16.mxu0 0
    %659 = vmatpush1.bf16.msra.mxu0 0
    %660 = vmatprep.subr.bf16.mxu0 0
    %661 = vmatpush1.bf16.msra.mxu0 0
    %662 = vmatprep.subr.bf16.mxu0 0
    %663 = vmatpush1.bf16.msra.mxu0 0
    %664 = vmatprep.subr.bf16.mxu0 0
    %665 = vmatpush1.bf16.msra.mxu0 0
    %666 = vmatprep.subr.bf16.mxu0 0
    %667 = vmatpush1.bf16.msra.mxu0 0
    %668 = vmatprep.subr.bf16.mxu0 0
    %669 = vmatpush1.bf16.msra.mxu0 0
    %670 = vmatprep.subr.bf16.mxu0 0
    %671 = vmatpush1.bf16.msra.mxu0 0
    %672 = vmatprep.subr.bf16.mxu0 0
    %673 = vmatpush1.bf16.msra.mxu0 0
    %674 = vmatprep.subr.bf16.mxu0 0
    %675 = vmatpush1.bf16.msra.mxu0 0
    %676 = vmatprep.subr.bf16.mxu0 0
    %677 = vmatpush1.bf16.msra.mxu0 0
    %678 = vmatprep.subr.bf16.mxu0 0
    %679 = vmatpush1.bf16.msra.mxu0 0
    %680 = vmatprep.subr.bf16.mxu0 0
    %681 = vmatpush1.bf16.msra.mxu0 0
    %682 = vmatprep.mubr.bf16.mxu0 0
    %683 = vmatmul.mubr.bf16.gmra.mrb[0].mxu0 %v648
    %v684 = vpop.f32.mrb[0].mxu0
    %v685 = vadd.f32 0.0, %v684
    %v686 = vpop.f32.mrb[0].mxu0
    %v687 = vpop.f32.mrb[0].mxu0
    %v688 = vpop.f32.mrb[0].mxu0
    %689 = vdwg.mxu0
    %v690 = vadd.f32 %v148, %v685
    %v691 = vxor.u32 %v690, 2147483648
    %v692 = vmul.f32 %v691, 1.442695
    %v693 = vpow.pop %v692
    %v694 = vadd.f32 %v693, 1.0
    %v695 = vrcp.pop %v694
    %v696 = vmul.f32 1.0, %v695
    %v697 = vtanh.pop %v690
    %v698 = vmul.f32 %v696, %v615
    %700 = vrot.lane.b32.xlu0 %v697, 64
    %v701 = vpop.permute.xlu0 %700
    %v703 = vmul.f32 %v696, %v701
    %705 = vrot.lane.b32.xlu0 %v703, 32
    %v706 = vpop.permute.xlu0 %705
    %v708 = vadd.f32 %v698, %v706
    %v709 = vtanh.pop %v708
    %711 = vrot.lane.b32.xlu0 %v709, 64
    %v712 = vpop.permute.xlu0 %711
    %v714 = vmul.f32 %v696, %v712
    %716 = vrot.lane.b32.xlu0 %v714, 64
    %v717 = vpop.permute.xlu0 %716
    %719 = vst.msk [vmem:[#allocation4 + $0x8] sm:$0xff] %vm348, %v717
    %v720 = vpack.c.bf16 %v714, %v714
    %v721 = vld [vmem:[%s2] sm:$0xf]
    %v722 = vld [vmem:[%s2 + $0x4] sm:$0xf]
    %v723 = vld [vmem:[%s2 + $0x8] sm:$0xf]
    %v724 = vld [vmem:[%s2 + $0xc] sm:$0xf]
    %726 = vrot.lane.b32.xlu0 %v720, 32
    %v727 = vpop.permute.xlu0 %726
    %v732 = vunpack.c.l.b16 %v721
    %v733 = vunpack.c.l.b16 %v722
    %v734 = vunpack.c.l.b16 %v723
    %v735 = vunpack.c.l.b16 %v724
    %v736 = vpack.c.b16 %v733, %v732
    %v737 = vpack.c.b16 %v735, %v734
    %v741 = vsel %vm178, %v727, 0
    %743 = vmatprep.subr.bf16.mxu0 0
    %744 = vmatpush1.bf16.msra.mxu0 %v736
    %745 = vmatprep.subr.bf16.mxu0 0
    %746 = vmatpush1.bf16.msra.mxu0 %v737
    %747 = vmatprep.subr.bf16.mxu0 0
    %748 = vmatpush1.bf16.msra.mxu0 0
    %749 = vmatprep.subr.bf16.mxu0 0
    %750 = vmatpush1.bf16.msra.mxu0 0
    %751 = vmatprep.subr.bf16.mxu0 0
    %752 = vmatpush1.bf16.msra.mxu0 0
    %753 = vmatprep.subr.bf16.mxu0 0
    %754 = vmatpush1.bf16.msra.mxu0 0
    %755 = vmatprep.subr.bf16.mxu0 0
    %756 = vmatpush1.bf16.msra.mxu0 0
    %757 = vmatprep.subr.bf16.mxu0 0
    %758 = vmatpush1.bf16.msra.mxu0 0
    %759 = vmatprep.subr.bf16.mxu0 0
    %760 = vmatpush1.bf16.msra.mxu0 0
    %761 = vmatprep.subr.bf16.mxu0 0
    %762 = vmatpush1.bf16.msra.mxu0 0
    %763 = vmatprep.subr.bf16.mxu0 0
    %764 = vmatpush1.bf16.msra.mxu0 0
    %765 = vmatprep.subr.bf16.mxu0 0
    %766 = vmatpush1.bf16.msra.mxu0 0
    %767 = vmatprep.subr.bf16.mxu0 0
    %768 = vmatpush1.bf16.msra.mxu0 0
    %769 = vmatprep.subr.bf16.mxu0 0
    %770 = vmatpush1.bf16.msra.mxu0 0
    %771 = vmatprep.subr.bf16.mxu0 0
    %772 = vmatpush1.bf16.msra.mxu0 0
    %773 = vmatprep.subr.bf16.mxu0 0
    %774 = vmatpush1.bf16.msra.mxu0 0
    %775 = vmatprep.mubr.bf16.mxu0 0
    %776 = vmatmul.mubr.bf16.gmra.mrb[0].mxu0 %v741
    %v777 = vpop.f32.mrb[0].mxu0
    %v778 = vadd.f32 0.0, %v777
    %v779 = vpop.f32.mrb[0].mxu0
    %v780 = vpop.f32.mrb[0].mxu0
    %v781 = vpop.f32.mrb[0].mxu0
    %782 = vdwg.mxu0
    %v783 = vadd.f32 %v153, %v778
    %v784 = vxor.u32 %v783, 2147483648
    %v785 = vmul.f32 %v784, 1.442695
    %v786 = vpow.pop %v785
    %v787 = vadd.f32 %v786, 1.0
    %v788 = vrcp.pop %v787
    %v789 = vmul.f32 1.0, %v788
    %v790 = vtanh.pop %v783
    %v791 = vmul.f32 %v789, %v708
    %793 = vrot.lane.b32.xlu0 %v790, 64
    %v794 = vpop.permute.xlu0 %793
    %v796 = vmul.f32 %v789, %v794
    %798 = vrot.lane.b32.xlu0 %v796, 32
    %v799 = vpop.permute.xlu0 %798
    %v801 = vadd.f32 %v791, %v799
    %v802 = vtanh.pop %v801
    %804 = vrot.lane.b32.xlu0 %v802, 64
    %v805 = vpop.permute.xlu0 %804
    %v807 = vmul.f32 %v789, %v805
    %809 = vrot.lane.b32.xlu0 %v807, 96
    %v810 = vpop.permute.xlu0 %809
    %812 = vst.msk [vmem:[#allocation4 + $0x8] sm:$0xff] %vm442, %v810
    %v813 = vpack.c.bf16 %v807, %v807
    %v814 = vld [vmem:[%s2] sm:$0xf]
    %v815 = vld [vmem:[%s2 + $0x4] sm:$0xf]
    %v816 = vld [vmem:[%s2 + $0x8] sm:$0xf]
    %v817 = vld [vmem:[%s2 + $0xc] sm:$0xf]
    %819 = vrot.lane.b32.xlu0 %v813, 32
    %v820 = vpop.permute.xlu0 %819
    %v825 = vunpack.c.l.b16 %v814
    %v826 = vunpack.c.l.b16 %v815
    %v827 = vunpack.c.l.b16 %v816
    %v828 = vunpack.c.l.b16 %v817
    %v829 = vpack.c.b16 %v826, %v825
    %v830 = vpack.c.b16 %v828, %v827
    %v834 = vsel %vm178, %v820, 0
    %836 = vmatprep.subr.bf16.mxu0 0
    %837 = vmatpush1.bf16.msra.mxu0 %v829
    %838 = vmatprep.subr.bf16.mxu0 0
    %839 = vmatpush1.bf16.msra.mxu0 %v830
    %840 = vmatprep.subr.bf16.mxu0 0
    %841 = vmatpush1.bf16.msra.mxu0 0
    %842 = vmatprep.subr.bf16.mxu0 0
    %843 = vmatpush1.bf16.msra.mxu0 0
    %844 = vmatprep.subr.bf16.mxu0 0
    %845 = vmatpush1.bf16.msra.mxu0 0
    %846 = vmatprep.subr.bf16.mxu0 0
    %847 = vmatpush1.bf16.msra.mxu0 0
    %848 = vmatprep.subr.bf16.mxu0 0
    %849 = vmatpush1.bf16.msra.mxu0 0
    %850 = vmatprep.subr.bf16.mxu0 0
    %851 = vmatpush1.bf16.msra.mxu0 0
    %852 = vmatprep.subr.bf16.mxu0 0
    %853 = vmatpush1.bf16.msra.mxu0 0
    %854 = vmatprep.subr.bf16.mxu0 0
    %855 = vmatpush1.bf16.msra.mxu0 0
    %856 = vmatprep.subr.bf16.mxu0 0
    %857 = vmatpush1.bf16.msra.mxu0 0
    %858 = vmatprep.subr.bf16.mxu0 0
    %859 = vmatpush1.bf16.msra.mxu0 0
    %860 = vmatprep.subr.bf16.mxu0 0
    %861 = vmatpush1.bf16.msra.mxu0 0
    %862 = vmatprep.subr.bf16.mxu0 0
    %863 = vmatpush1.bf16.msra.mxu0 0
    %864 = vmatprep.subr.bf16.mxu0 0
    %865 = vmatpush1.bf16.msra.mxu0 0
    %866 = vmatprep.subr.bf16.mxu0 0
    %867 = vmatpush1.bf16.msra.mxu0 0
    %868 = vmatprep.mubr.bf16.mxu0 0
    %869 = vmatmul.mubr.bf16.gmra.mrb[0].mxu0 %v834
    %v870 = vpop.f32.mrb[0].mxu0
    %v871 = vadd.f32 0.0, %v870
    %v872 = vpop.f32.mrb[0].mxu0
    %v873 = vpop.f32.mrb[0].mxu0
    %v874 = vpop.f32.mrb[0].mxu0
    %875 = vdwg.mxu0
    %v876 = vadd.f32 %v156, %v871
    %v877 = vxor.u32 %v876, 2147483648
    %v878 = vmul.f32 %v877, 1.442695
    %v879 = vpow.pop %v878
    %v880 = vadd.f32 %v879, 1.0
    %v881 = vrcp.pop %v880
    %v882 = vmul.f32 1.0, %v881
    %v883 = vtanh.pop %v876
    %v884 = vmul.f32 %v882, %v801
    %886 = vrot.lane.b32.xlu0 %v883, 64
    %v887 = vpop.permute.xlu0 %886
    %v889 = vmul.f32 %v882, %v887
    %891 = vrot.lane.b32.xlu0 %v889, 32
    %v892 = vpop.permute.xlu0 %891
    %v894 = vadd.f32 %v884, %v892
    %v895 = vtanh.pop %v894
    %897 = vrot.lane.b32.xlu0 %v895, 64
    %v898 = vpop.permute.xlu0 %897
    %v900 = vmul.f32 %v882, %v898
    %901 = vst.msk [vmem:[#allocation4 + $0x8] sm:$0xff] %vm532, %v900
    %903 = vrot.lane.b32.xlu0 %v900, 32
    %v904 = vpop.permute.xlu0 %903
    %906 = vst.msk [vmem:[#allocation2] sm:$0xff] %vm178, %v904
    %908 = vrot.lane.b32.xlu0 %v894, 96
    %v909 = vpop.permute.xlu0 %908
    %911 = vst.msk [vmem:[#allocation3] sm:$0xff] %vm178, %v909
    // Predicated region
    $region30: #{tpu_custom_call.1} parent=1 // pred_check
      %p912 = pneg %p29
    $region31: #{tpu_custom_call.1} parent=1 // pred_check_branch
      %914 = sbr.rel (%p912) target = $region33
    $region32: #{tpu_custom_call.1} parent=1 // pred_region
      %915 = vst.msk [vmem:[#allocation6] sm:$0xff] %vm178, %v904
      %916 = vst.msk [vmem:[#allocation8] sm:$0xff] %vm178, %v909
    $region33: #{tpu_custom_call.1} parent=1 // pred_fallthru
      _
    // Predicated region
    $region34: #{tpu_custom_call.1} parent=1 // pred_check
      _
    $region35: #{tpu_custom_call.1} parent=1 // pred_check_branch
      %918 = sbr.rel (0) target = $region37
    $region36: #{tpu_custom_call.1} parent=1 // pred_region
      %s920 = ssub.s32 256, 256
      %921 = vsyncadd [#allocation5], %s920
      %s923 = sshll.u32 [#allocation4], 4
      %s924 = int_to_ptr.vmem [resolvable:$true] %s923
      %926 = dma.vmem_to_hbm [thread:$0]  %s924, 256, %s6, [#allocation5]
    $region37: #{tpu_custom_call.1} parent=1 // pred_fallthru
      _
    // Predicated region
    $region38: #{tpu_custom_call.1} parent=1 // pred_check
      _
    $region39: #{tpu_custom_call.1} parent=1 // pred_check_branch
      %928 = sbr.rel (0) target = $region41
    $region40: #{tpu_custom_call.1} parent=1 // pred_region
      %s930 = ssub.s32 128, 128
      %931 = vsyncadd [#allocation7], %s930
      %s933 = sshll.u32 [#allocation6], 4
      %s934 = int_to_ptr.vmem [resolvable:$true] %s933
      %936 = dma.vmem_to_hbm [thread:$0]  %s934, 128, %s7, [#allocation7]
    $region41: #{tpu_custom_call.1} parent=1 // pred_fallthru
      _
    // Predicated region
    $region42: #{tpu_custom_call.1} parent=1 // pred_check
      _
    $region43: #{tpu_custom_call.1} parent=1 // pred_check_branch
      %938 = sbr.rel (0) target = $region45
    $region44: #{tpu_custom_call.1} parent=1 // pred_region
      %s940 = ssub.s32 128, 128
      %941 = vsyncadd [#allocation7], %s940
      %s943 = sshll.u32 [#allocation8], 4
      %s944 = int_to_ptr.vmem [resolvable:$true] %s943
      %946 = dma.vmem_to_hbm [thread:$0]  %s944, 128, %s8, [#allocation7]
    $region45: #{tpu_custom_call.1} parent=1 // pred_fallthru
      _
    // Predicated region
    $region46: #{tpu_custom_call.1} parent=1 // pred_check
      _
    $region47: #{tpu_custom_call.1} parent=1 // pred_check_branch
      %948 = sbr.rel (0) target = $region49
    $region48: #{tpu_custom_call.1} parent=1 // pred_region
      %949 = dma.done [#allocation5], 256
    $region49: #{tpu_custom_call.1} parent=1 // pred_fallthru
      _
    // Predicated region
    $region50: #{tpu_custom_call.1} parent=1 // pred_check
      _
    $region51: #{tpu_custom_call.1} parent=1 // pred_check_branch
      %951 = sbr.rel (0) target = $region53
    $region52: #{tpu_custom_call.1} parent=1 // pred_region
      %952 = dma.done [#allocation7], 128
    $region53: #{tpu_custom_call.1} parent=1 // pred_fallthru
      _
    // Predicated region
    $region54: #{tpu_custom_call.1} parent=1 // pred_check
      _
    $region55: #{tpu_custom_call.1} parent=1 // pred_check_branch
      %954 = sbr.rel (0) target = $region57
    $region56: #{tpu_custom_call.1} parent=1 // pred_region
      %955 = dma.done [#allocation7], 128
    $region57: #{tpu_custom_call.1} parent=1 // pred_fallthru
      _
    %956 = vsyncpa [#allocation5], 1
    %957 = vsyncpa [#allocation7], 1

</llo_original>
